<compile_context>
chip_gen: v5e
topology: v5e:2x2
jax: 0.10.0
libtpu: 0.0.40
codegen_flags: <defaults>
</compile_context>

<pallas_src>
import functools
import math

import jax
import jax.numpy as jnp
from jax.experimental import pallas as pl
from jax.experimental.pallas import tpu as pltpu


def mha_kernel(xq_ref, xk_ref, xv_ref, wq_ref, wk_ref, wv_ref, wfc_ref,
               gamma_ref, beta_ref, out_ref, acc_ref, *, scale, eps):
    """One (batch, query-tile, head) grid step of multi-head attention."""
    h = pl.program_id(2)
    num_heads = pl.num_programs(2)

    @pl.when(h == 0)
    def _():
        acc_ref[...] = jnp.zeros_like(acc_ref)

    xq = xq_ref[0]                                                    # [tq, Dg]

    # Per-head projections (head-major weight slabs -> no lane slicing).
    q = jnp.dot(xq, wq_ref[0], preferred_element_type=jnp.float32)    # [tq, dk]
    k = jnp.dot(xk_ref[0], wk_ref[0], preferred_element_type=jnp.float32)  # [S, dk]
    v = jnp.dot(xv_ref[0], wv_ref[0], preferred_element_type=jnp.float32)  # [S, dv]

    # scores = (Q K^T) / sqrt(d_k)
    scores = jax.lax.dot_general(
        q, k, dimension_numbers=(((1,), (1,)), ((), ())),
        preferred_element_type=jnp.float32) * scale                   # [tq, S]

    # Row softmax; keep the un-normalized p and fold 1/denom in after attn@V.
    m = jnp.max(scores, axis=-1, keepdims=True)
    p = jnp.exp(scores - m)                                           # [tq, S]
    denom = jnp.sum(p, axis=-1, keepdims=True)                        # [tq, 1]

    ctx = jnp.dot(p, v, preferred_element_type=jnp.float32)           # [tq, dv]
    ctx = ctx * pl.reciprocal(denom, approx=True)

    # This head's slice of fc(concat_context) == ctx_h @ W_fc[h]; accumulate.
    acc_ref[...] += jnp.dot(ctx, wfc_ref[0],
                            preferred_element_type=jnp.float32)       # [tq, Dg]

    @pl.when(h == num_heads - 1)
    def _():
        y = acc_ref[...] + xq                                         # residual
        mean = jnp.mean(y, axis=-1, keepdims=True)
        yc = y - mean
        var = jnp.mean(yc * yc, axis=-1, keepdims=True)
        inv = jax.lax.rsqrt(var + eps)
        out_ref[0] = (yc * inv) * gamma_ref[...] + beta_ref[...]


def multi_head_attention(input_q, input_k, input_v, params, *, n_head, d_k,
                         d_v, block_q=128, ln_eps=1e-5):
    b, s, d_gene = input_q.shape
    tq = min(block_q, s)
    assert s % tq == 0, "sequence length must be divisible by the query tile"
    n_qt = s // tq

    # Head-major weight layouts (reshape/transpose is cheap wrapper-side work).
    wq = params["w_q"].reshape(d_gene, n_head, d_k).transpose(1, 0, 2)   # [H,Dg,dk]
    wk = params["w_k"].reshape(d_gene, n_head, d_k).transpose(1, 0, 2)   # [H,Dg,dk]
    wv = params["w_v"].reshape(d_gene, n_head, d_v).transpose(1, 0, 2)   # [H,Dg,dv]
    wfc = params["w_fc"].reshape(n_head, d_v, d_gene)                    # [H,dv,Dg]
    gamma = params["ln_gamma"].reshape(1, d_gene)
    beta = params["ln_beta"].reshape(1, d_gene)

    kernel = functools.partial(mha_kernel, scale=1.0 / math.sqrt(d_k),
                               eps=ln_eps)

    flops = (2 * b * s * d_gene * n_head * (2 * d_k + d_v)     # Q/K/V proj
             + 2 * b * n_head * s * s * (d_k + d_v)            # scores + attn@V
             + 2 * b * s * n_head * d_v * d_gene)              # fc
    bytes_accessed = 4 * (3 * b * s * d_gene                   # inputs
                          + d_gene * n_head * (2 * d_k + d_v)  # W_Q/K/V
                          + n_head * d_v * d_gene + 2 * d_gene # W_fc, ln
                          + b * s * d_gene)                    # output

    return pl.pallas_call(
        kernel,
        out_shape=jax.ShapeDtypeStruct((b, s, d_gene), jnp.float32),
        grid_spec=pltpu.PrefetchScalarGridSpec(
            num_scalar_prefetch=0,
            grid=(b, n_qt, n_head),
            in_specs=[
                pl.BlockSpec((1, tq, d_gene), lambda bi, ti, hi: (bi, ti, 0)),  # Q in
                pl.BlockSpec((1, s, d_gene), lambda bi, ti, hi: (bi, 0, 0)),    # K in
                pl.BlockSpec((1, s, d_gene), lambda bi, ti, hi: (bi, 0, 0)),    # V in
                pl.BlockSpec((1, d_gene, d_k), lambda bi, ti, hi: (hi, 0, 0)),  # W_Q
                pl.BlockSpec((1, d_gene, d_k), lambda bi, ti, hi: (hi, 0, 0)),  # W_K
                pl.BlockSpec((1, d_gene, d_v), lambda bi, ti, hi: (hi, 0, 0)),  # W_V
                pl.BlockSpec((1, d_v, d_gene), lambda bi, ti, hi: (hi, 0, 0)),  # W_fc
                pl.BlockSpec((1, d_gene), lambda bi, ti, hi: (0, 0)),           # gamma
                pl.BlockSpec((1, d_gene), lambda bi, ti, hi: (0, 0)),           # beta
            ],
            out_specs=pl.BlockSpec((1, tq, d_gene),
                                   lambda bi, ti, hi: (bi, ti, 0)),
            scratch_shapes=[pltpu.VMEM((tq, d_gene), jnp.float32)],
        ),
        compiler_params=pltpu.CompilerParams(
            dimension_semantics=("parallel", "parallel", "arbitrary"),
            vmem_limit_bytes=32 * 1024 * 1024,
        ),
        cost_estimate=pl.CostEstimate(flops=flops,
                                      transcendentals=b * n_head * s * s,
                                      bytes_accessed=bytes_accessed),
    )(input_q, input_k, input_v, wq, wk, wv, wfc, gamma, beta)


def mha_reference(xq, xk, xv, params, *, n_head, d_k, d_v, ln_eps=1e-5):
    """Pure-JAX reference mirroring the PyTorch forward."""
    b, s, d_gene = xq.shape
    q = (xq @ params["w_q"]).reshape(b, s, n_head, d_k).transpose(0, 2, 1, 3)
    k = (xk @ params["w_k"]).reshape(b, s, n_head, d_k).transpose(0, 2, 1, 3)
    v = (xv @ params["w_v"]).reshape(b, s, n_head, d_v).transpose(0, 2, 1, 3)
    scores = jnp.einsum("bhqd,bhkd->bhqk", q, k) / math.sqrt(d_k)
    attn = jax.nn.softmax(scores, axis=-1)
    ctx = jnp.einsum("bhqk,bhkd->bhqd", attn, v)
    ctx = ctx.transpose(0, 2, 1, 3).reshape(b, s, n_head * d_v)
    y = ctx @ params["w_fc"] + xq
    mean = y.mean(-1, keepdims=True)
    var = ((y - mean) ** 2).mean(-1, keepdims=True)
    y = (y - mean) * jax.lax.rsqrt(var + ln_eps)
    return (y * params["ln_gamma"].reshape(1, 1, d_gene)
            + params["ln_beta"].reshape(1, 1, d_gene))


def init_params(key, d_gene, d_k, d_v, n_head):
    ks = jax.random.split(key, 4)
    s_in = 1.0 / math.sqrt(d_gene)
    s_fc = 1.0 / math.sqrt(n_head * d_v)
    return {
        "w_q": jax.random.normal(ks[0], (d_gene, n_head * d_k), jnp.float32) * s_in,
        "w_k": jax.random.normal(ks[1], (d_gene, n_head * d_k), jnp.float32) * s_in,
        "w_v": jax.random.normal(ks[2], (d_gene, n_head * d_v), jnp.float32) * s_in,
        "w_fc": jax.random.normal(ks[3], (n_head * d_v, d_gene), jnp.float32) * s_fc,
        "ln_gamma": jnp.ones((d_gene,), jnp.float32),
        "ln_beta": jnp.zeros((d_gene,), jnp.float32),
    }


if __name__ == "__main__":
    key = jax.random.PRNGKey(0)
    # Config: d_gene=128 (lane-dense), n_head=4, d_k=d_v=32, batch=2, seq=16.
    B, S, D_GENE, N_HEAD, D_K, D_V = 2, 16, 128, 4, 32, 32

    k_q, k_k, k_v, k_p = jax.random.split(key, 4)
    input_q = jax.random.normal(k_q, (B, S, D_GENE), jnp.float32)
    input_k = jax.random.normal(k_k, (B, S, D_GENE), jnp.float32)
    input_v = jax.random.normal(k_v, (B, S, D_GENE), jnp.float32)
    params = init_params(k_p, D_GENE, D_K, D_V, N_HEAD)

    # block_q=8 so the query-tile grid axis is exercised (2 tiles of 8 rows).
    out = multi_head_attention(input_q, input_k, input_v, params,
                               n_head=N_HEAD, d_k=D_K, d_v=D_V, block_q=8)
    out = jax.block_until_ready(out)

    ref = mha_reference(input_q, input_k, input_v, params,
                        n_head=N_HEAD, d_k=D_K, d_v=D_V)
    assert out.shape == (B, S, D_GENE), out.shape
    assert bool(jnp.all(jnp.isfinite(out)))
    max_err = float(jnp.max(jnp.abs(out - ref)))
    assert max_err < 2e-2, f"mismatch vs reference: {max_err}"
    print("KERNEL_OK")
</pallas_src>

<mosaic_0001>
module attributes {stable_mosaic.version = 11 : i64} {
  func.func @mha_kernel(%arg0: i32, %arg1: i32, %arg2: i32, %arg3: memref<1x8x128xf32, #tpu.memory_space<vmem>>, %arg4: memref<1x16x128xf32, #tpu.memory_space<vmem>>, %arg5: memref<1x16x128xf32, #tpu.memory_space<vmem>>, %arg6: memref<1x128x32xf32, #tpu.memory_space<vmem>>, %arg7: memref<1x128x32xf32, #tpu.memory_space<vmem>>, %arg8: memref<1x128x32xf32, #tpu.memory_space<vmem>>, %arg9: memref<1x32x128xf32, #tpu.memory_space<vmem>>, %arg10: memref<1x128xf32, #tpu.memory_space<vmem>>, %arg11: memref<1x128xf32, #tpu.memory_space<vmem>>, %arg12: memref<1x8x128xf32, #tpu.memory_space<vmem>>, %arg13: memref<8x128xf32, #tpu.memory_space<vmem>>) attributes {dimension_semantics = [#tpu.dimension_semantics<parallel>, #tpu.dimension_semantics<parallel>, #tpu.dimension_semantics<arbitrary>], iteration_bounds = array<i64: 2, 2, 4>, scalar_prefetch = 0 : i64, scratch_operands = 1 : i64, tpu.core_type = #tpu.core_type<tc>, window_params = [{transform_indices = @transform_0, window_bounds = array<i64: 1, 8, 128>}, {transform_indices = @transform_1, window_bounds = array<i64: 1, 16, 128>}, {transform_indices = @transform_2, window_bounds = array<i64: 1, 16, 128>}, {transform_indices = @transform_3, window_bounds = array<i64: 1, 128, 32>}, {transform_indices = @transform_4, window_bounds = array<i64: 1, 128, 32>}, {transform_indices = @transform_5, window_bounds = array<i64: 1, 128, 32>}, {transform_indices = @transform_6, window_bounds = array<i64: 1, 32, 128>}, {pipeline_mode = #tpu.pipeline_mode<synchronous>, transform_indices = @transform_7, window_bounds = array<i64: 1, 128>}, {pipeline_mode = #tpu.pipeline_mode<synchronous>, transform_indices = @transform_8, window_bounds = array<i64: 1, 128>}, {transform_indices = @transform_9, window_bounds = array<i64: 1, 8, 128>}]} {
    %c0_i32 = arith.constant 0 : i32
    %0 = arith.cmpi eq, %arg2, %c0_i32 : i32
    %1 = arith.extui %0 : i1 to i32
    %c0_i32_0 = arith.constant 0 : i32
    %2 = arith.cmpi ne, %1, %c0_i32_0 : i32
    scf.if %2 {
      %cst_34 = arith.constant 0.000000e+00 : f32
      %41 = vector.broadcast %cst_34 : f32 to vector<8x128xf32>
      %c0_35 = arith.constant 0 : index
      %c0_36 = arith.constant 0 : index
      %42 = vector.load %arg13[%c0_35, %c0_36] : memref<8x128xf32, #tpu.memory_space<vmem>>, vector<8x128xf32>
      tpu.vector_store %arg13[%c0_35, %c0_36], %41 {strides = array<i32>} : memref<8x128xf32, #tpu.memory_space<vmem>>, vector<8x128xf32>,
    } else {
    }
    %c0 = arith.constant 0 : index
    %c0_1 = arith.constant 0 : index
    %c0_2 = arith.constant 0 : index
    %3 = vector.load %arg3[%c0, %c0_1, %c0_2] : memref<1x8x128xf32, #tpu.memory_space<vmem>>, vector<1x8x128xf32>
    %4 = vector.shape_cast %3 : vector<1x8x128xf32> to vector<8x128xf32>
    %c0_3 = arith.constant 0 : index
    %c0_4 = arith.constant 0 : index
    %c0_5 = arith.constant 0 : index
    %5 = vector.load %arg6[%c0_3, %c0_4, %c0_5] : memref<1x128x32xf32, #tpu.memory_space<vmem>>, vector<1x128x32xf32>
    %6 = vector.shape_cast %5 : vector<1x128x32xf32> to vector<128x32xf32>
    %cst = arith.constant dense<0.000000e+00> : vector<8x32xf32>
    %7 = tpu.matmul %4, %6, %cst {dimension_numbers = #tpu.dot_dimension_numbers<[1], [0], [0], [1], [0, 0, 1, 1], [], []>} : vector<8x128xf32>, vector<128x32xf32>, vector<8x32xf32> -> vector<8x32xf32>
    %c0_6 = arith.constant 0 : index
    %c0_7 = arith.constant 0 : index
    %c0_8 = arith.constant 0 : index
    %8 = vector.load %arg4[%c0_6, %c0_7, %c0_8] : memref<1x16x128xf32, #tpu.memory_space<vmem>>, vector<1x16x128xf32>
    %9 = vector.shape_cast %8 : vector<1x16x128xf32> to vector<16x128xf32>
    %c0_9 = arith.constant 0 : index
    %c0_10 = arith.constant 0 : index
    %c0_11 = arith.constant 0 : index
    %10 = vector.load %arg7[%c0_9, %c0_10, %c0_11] : memref<1x128x32xf32, #tpu.memory_space<vmem>>, vector<1x128x32xf32>
    %11 = vector.shape_cast %10 : vector<1x128x32xf32> to vector<128x32xf32>
    %cst_12 = arith.constant dense<0.000000e+00> : vector<16x32xf32>
    %12 = tpu.matmul %9, %11, %cst_12 {dimension_numbers = #tpu.dot_dimension_numbers<[1], [0], [0], [1], [0, 0, 1, 1], [], []>} : vector<16x128xf32>, vector<128x32xf32>, vector<16x32xf32> -> vector<16x32xf32>
    %c0_13 = arith.constant 0 : index
    %c0_14 = arith.constant 0 : index
    %c0_15 = arith.constant 0 : index
    %13 = vector.load %arg5[%c0_13, %c0_14, %c0_15] : memref<1x16x128xf32, #tpu.memory_space<vmem>>, vector<1x16x128xf32>
    %14 = vector.shape_cast %13 : vector<1x16x128xf32> to vector<16x128xf32>
    %c0_16 = arith.constant 0 : index
    %c0_17 = arith.constant 0 : index
    %c0_18 = arith.constant 0 : index
    %15 = vector.load %arg8[%c0_16, %c0_17, %c0_18] : memref<1x128x32xf32, #tpu.memory_space<vmem>>, vector<1x128x32xf32>
    %16 = vector.shape_cast %15 : vector<1x128x32xf32> to vector<128x32xf32>
    %cst_19 = arith.constant dense<0.000000e+00> : vector<16x32xf32>
    %17 = tpu.matmul %14, %16, %cst_19 {dimension_numbers = #tpu.dot_dimension_numbers<[1], [0], [0], [1], [0, 0, 1, 1], [], []>} : vector<16x128xf32>, vector<128x32xf32>, vector<16x32xf32> -> vector<16x32xf32>
    %cst_20 = arith.constant dense<0.000000e+00> : vector<8x16xf32>
    %18 = tpu.matmul %7, %12, %cst_20 {dimension_numbers = #tpu.dot_dimension_numbers<[1], [1], [0], [0], [0, 0, 1, 0], [], []>} : vector<8x32xf32>, vector<16x32xf32>, vector<8x16xf32> -> vector<8x16xf32>
    %cst_21 = arith.constant 0.176776692 : f32
    %19 = vector.broadcast %cst_21 : f32 to vector<8x16xf32>
    %20 = arith.mulf %18, %19 : vector<8x16xf32>
    %cst_22 = arith.constant dense<0xFF800000> : vector<8xf32>
    %21 = vector.multi_reduction <maximumf>, %20, %cst_22 [1] : vector<8x16xf32> to vector<8xf32>
    %22 = vector.shape_cast %21 : vector<8xf32> to vector<8x1xf32>
    %23 = vector.broadcast %22 : vector<8x1xf32> to vector<8x16xf32>
    %24 = arith.subf %20, %23 : vector<8x16xf32>
    %25 = math.exp %24 : vector<8x16xf32>
    %cst_23 = arith.constant dense<0.000000e+00> : vector<8xf32>
    %26 = vector.multi_reduction <add>, %25, %cst_23 [1] : vector<8x16xf32> to vector<8xf32>
    %27 = vector.shape_cast %26 : vector<8xf32> to vector<8x1xf32>
    %cst_24 = arith.constant dense<0.000000e+00> : vector<8x32xf32>
    %28 = tpu.matmul %25, %17, %cst_24 {dimension_numbers = #tpu.dot_dimension_numbers<[1], [0], [0], [1], [0, 0, 1, 1], [], []>} : vector<8x16xf32>, vector<16x32xf32>, vector<8x32xf32> -> vector<8x32xf32>
    %29 = tpu.reciprocal %27 {approx = true} : vector<8x1xf32> -> vector<8x1xf32>
    %30 = vector.broadcast %29 : vector<8x1xf32> to vector<8x32xf32>
    %31 = arith.mulf %28, %30 : vector<8x32xf32>
    %c0_25 = arith.constant 0 : index
    %c0_26 = arith.constant 0 : index
    %32 = vector.load %arg13[%c0_25, %c0_26] : memref<8x128xf32, #tpu.memory_space<vmem>>, vector<8x128xf32>
    %c0_27 = arith.constant 0 : index
    %c0_28 = arith.constant 0 : index
    %c0_29 = arith.constant 0 : index
    %33 = vector.load %arg9[%c0_27, %c0_28, %c0_29] : memref<1x32x128xf32, #tpu.memory_space<vmem>>, vector<1x32x128xf32>
    %34 = vector.shape_cast %33 : vector<1x32x128xf32> to vector<32x128xf32>
    %cst_30 = arith.constant dense<0.000000e+00> : vector<8x128xf32>
    %35 = tpu.matmul %31, %34, %cst_30 {dimension_numbers = #tpu.dot_dimension_numbers<[1], [0], [0], [1], [0, 0, 1, 1], [], []>} : vector<8x32xf32>, vector<32x128xf32>, vector<8x128xf32> -> vector<8x128xf32>
    %36 = arith.addf %32, %35 : vector<8x128xf32>
    %c0_31 = arith.constant 0 : index
    %c0_32 = arith.constant 0 : index
    %37 = vector.load %arg13[%c0_31, %c0_32] : memref<8x128xf32, #tpu.memory_space<vmem>>, vector<8x128xf32>
    tpu.vector_store %arg13[%c0_31, %c0_32], %36 {strides = array<i32>} : memref<8x128xf32, #tpu.memory_space<vmem>>, vector<8x128xf32>,
    %c3_i32 = arith.constant 3 : i32
    %38 = arith.cmpi eq, %arg2, %c3_i32 : i32
    %39 = arith.extui %38 : i1 to i32
    %c0_i32_33 = arith.constant 0 : i32
    %40 = arith.cmpi ne, %39, %c0_i32_33 : i32
    scf.if %40 {
      %c0_34 = arith.constant 0 : index
      %c0_35 = arith.constant 0 : index
      %41 = vector.load %arg13[%c0_34, %c0_35] : memref<8x128xf32, #tpu.memory_space<vmem>>, vector<8x128xf32>
      %42 = arith.addf %41, %4 : vector<8x128xf32>
      %cst_36 = arith.constant dense<0.000000e+00> : vector<8xf32>
      %43 = vector.multi_reduction <add>, %42, %cst_36 [1] : vector<8x128xf32> to vector<8xf32>
      %44 = vector.shape_cast %43 : vector<8xf32> to vector<8x1xf32>
      %cst_37 = arith.constant 1.280000e+02 : f32
      %45 = vector.broadcast %cst_37 : f32 to vector<8x1xf32>
      %46 = arith.divf %44, %45 : vector<8x1xf32>
      %47 = vector.broadcast %46 : vector<8x1xf32> to vector<8x128xf32>
      %48 = arith.subf %42, %47 : vector<8x128xf32>
      %49 = arith.mulf %48, %48 : vector<8x128xf32>
      %cst_38 = arith.constant dense<0.000000e+00> : vector<8xf32>
      %50 = vector.multi_reduction <add>, %49, %cst_38 [1] : vector<8x128xf32> to vector<8xf32>
      %51 = vector.shape_cast %50 : vector<8xf32> to vector<8x1xf32>
      %cst_39 = arith.constant 1.280000e+02 : f32
      %52 = vector.broadcast %cst_39 : f32 to vector<8x1xf32>
      %53 = arith.divf %51, %52 : vector<8x1xf32>
      %cst_40 = arith.constant 9.99999974E-6 : f32
      %54 = vector.broadcast %cst_40 : f32 to vector<8x1xf32>
      %55 = arith.addf %53, %54 : vector<8x1xf32>
      %56 = math.rsqrt %55 : vector<8x1xf32>
      %57 = vector.broadcast %56 : vector<8x1xf32> to vector<8x128xf32>
      %58 = arith.mulf %48, %57 : vector<8x128xf32>
      %c0_41 = arith.constant 0 : index
      %c0_42 = arith.constant 0 : index
      %59 = vector.load %arg10[%c0_41, %c0_42] : memref<1x128xf32, #tpu.memory_space<vmem>>, vector<1x128xf32>
      %60 = vector.broadcast %59 : vector<1x128xf32> to vector<8x128xf32>
      %61 = arith.mulf %58, %60 : vector<8x128xf32>
      %c0_43 = arith.constant 0 : index
      %c0_44 = arith.constant 0 : index
      %62 = vector.load %arg11[%c0_43, %c0_44] : memref<1x128xf32, #tpu.memory_space<vmem>>, vector<1x128xf32>
      %63 = vector.broadcast %62 : vector<1x128xf32> to vector<8x128xf32>
      %64 = arith.addf %61, %63 : vector<8x128xf32>
      %c0_45 = arith.constant 0 : index
      %c0_46 = arith.constant 0 : index
      %c0_47 = arith.constant 0 : index
      %65 = vector.load %arg12[%c0_45, %c0_46, %c0_47] : memref<1x8x128xf32, #tpu.memory_space<vmem>>, vector<1x8x128xf32>
      %66 = vector.shape_cast %65 : vector<1x8x128xf32> to vector<8x128xf32>
      %67 = vector.shape_cast %64 : vector<8x128xf32> to vector<1x8x128xf32>
      tpu.vector_store %arg12[%c0_45, %c0_46, %c0_47], %67 {strides = array<i32>} : memref<1x8x128xf32, #tpu.memory_space<vmem>>, vector<1x8x128xf32>,
    } else {
    }
    return
  }
  func.func @transform_0(%arg0: i32, %arg1: i32, %arg2: i32) -> (i32, i32, i32) {
    %c0_i32 = arith.constant 0 : i32
    %c0_i32_0 = arith.constant 0 : i32
    return %arg0, %arg1, %c0_i32 : i32, i32, i32
  }
  func.func @transform_1(%arg0: i32, %arg1: i32, %arg2: i32) -> (i32, i32, i32) {
    %c0_i32 = arith.constant 0 : i32
    %c0_i32_0 = arith.constant 0 : i32
    %c0_i32_1 = arith.constant 0 : i32
    return %arg0, %c0_i32, %c0_i32_0 : i32, i32, i32
  }
  func.func @transform_2(%arg0: i32, %arg1: i32, %arg2: i32) -> (i32, i32, i32) {
    %c0_i32 = arith.constant 0 : i32
    %c0_i32_0 = arith.constant 0 : i32
    %c0_i32_1 = arith.constant 0 : i32
    return %arg0, %c0_i32, %c0_i32_0 : i32, i32, i32
  }
  func.func @transform_3(%arg0: i32, %arg1: i32, %arg2: i32) -> (i32, i32, i32) {
    %c0_i32 = arith.constant 0 : i32
    %c0_i32_0 = arith.constant 0 : i32
    %c0_i32_1 = arith.constant 0 : i32
    return %arg2, %c0_i32, %c0_i32_0 : i32, i32, i32
  }
  func.func @transform_4(%arg0: i32, %arg1: i32, %arg2: i32) -> (i32, i32, i32) {
    %c0_i32 = arith.constant 0 : i32
    %c0_i32_0 = arith.constant 0 : i32
    %c0_i32_1 = arith.constant 0 : i32
    return %arg2, %c0_i32, %c0_i32_0 : i32, i32, i32
  }
  func.func @transform_5(%arg0: i32, %arg1: i32, %arg2: i32) -> (i32, i32, i32) {
    %c0_i32 = arith.constant 0 : i32
    %c0_i32_0 = arith.constant 0 : i32
    %c0_i32_1 = arith.constant 0 : i32
    return %arg2, %c0_i32, %c0_i32_0 : i32, i32, i32
  }
  func.func @transform_6(%arg0: i32, %arg1: i32, %arg2: i32) -> (i32, i32, i32) {
    %c0_i32 = arith.constant 0 : i32
    %c0_i32_0 = arith.constant 0 : i32
    %c0_i32_1 = arith.constant 0 : i32
    return %arg2, %c0_i32, %c0_i32_0 : i32, i32, i32
  }
  func.func @transform_7(%arg0: i32, %arg1: i32, %arg2: i32) -> (i32, i32) {
    %c0_i32 = arith.constant 0 : i32
    %c0_i32_0 = arith.constant 0 : i32
    %c0_i32_1 = arith.constant 0 : i32
    return %c0_i32, %c0_i32_0 : i32, i32
  }
  func.func @transform_8(%arg0: i32, %arg1: i32, %arg2: i32) -> (i32, i32) {
    %c0_i32 = arith.constant 0 : i32
    %c0_i32_0 = arith.constant 0 : i32
    %c0_i32_1 = arith.constant 0 : i32
    return %c0_i32, %c0_i32_0 : i32, i32
  }
  func.func @transform_9(%arg0: i32, %arg1: i32, %arg2: i32) -> (i32, i32, i32) {
    %c0_i32 = arith.constant 0 : i32
    %c0_i32_0 = arith.constant 0 : i32
    return %arg0, %arg1, %c0_i32 : i32, i32, i32
  }
}

</mosaic_0001>

<llo_original>
// kernel: tpu_custom_call.1
$region0: #{tpu_custom_call.1}
  #allocation0 [shape = 'u32[]', space=smem, size = 0x4, offset = 0x4, fixed_abs, tag = 'smem constant byte address 0x4 - core index']
  #allocation1 [shape = 'u32[72,128]{1,0:T(1,128)}', space=vmem, size = 0x9000, scoped, tag = 'internal scratch']
  #allocation2 [shape = 'f32[8,128]{1,0:T(8,128)}', space=vmem, size = 0x1000, scoped, tag = 'scratch operand']
  %s0 = inlined_call_operand.vmem [shape: f32[2,16,128], index: 0, kind: input, shape index: {}]
  %s1 = inlined_call_operand.vmem [shape: f32[2,16,128], index: 1, kind: input, shape index: {}]
  %s2 = inlined_call_operand.vmem [shape: f32[2,16,128], index: 2, kind: input, shape index: {}]
  %s3 = inlined_call_operand.vmem [shape: f32[4,128,32], index: 3, kind: input, shape index: {}]
  %s4 = inlined_call_operand.vmem [shape: f32[4,128,32], index: 4, kind: input, shape index: {}]
  %s5 = inlined_call_operand.vmem [shape: f32[4,128,32], index: 5, kind: input, shape index: {}]
  %s6 = inlined_call_operand.vmem [shape: f32[4,32,128], index: 6, kind: input, shape index: {}]
  %s7 = inlined_call_operand.vmem [shape: f32[1,128], index: 7, kind: input, shape index: {}]
  %s8 = inlined_call_operand.vmem [shape: f32[1,128], index: 8, kind: input, shape index: {}]
  %s9 = inlined_call_operand.hbm [shape: f32[2,16,128], index: 9, kind: output, shape index: {}]
  %s10 = sld [smem:[#allocation0]]
  $region77: #{tpu_custom_call.1} parent=0
    _
  %s12 = ssub.s32 1, %s10
  %s13 = scalar_select 0, %s12, %s10
  $region1: #{tpu_custom_call.1} parent=0
    #allocation3 [shape = 'u8[8192]{0}', space=vmem, size = 0x2000, scoped, tag = 'output window, operand 0']
    #allocation4 [shape = 's32[2]{0}', space=sflag, size = 0x8, scoped, tag = 'scoped memory for tpu_custom_call.1']
    %14 = vsyncpa [#allocation4], 0
    %s15 = scalar_lea.sflag [#allocation4], 1
    %16 = vsyncpa %s15, 0
    loop: start=0, step=1, limit=18
    $region2: #{tpu_custom_call.1} parent=1 // loop_pre_header
      _
    $region3: #{tpu_custom_call.1} parent=1 // loop_header
      %s18 = sphi 0, %s22
      %p19 = scmp.ge.s32.totalorder %s18, 18
      %s25 = sphi 0, %s44
      %s26 = sphi 0, %s40
      %s27 = sphi 0, %s36
      %s28 = sphi 0, %s25
      %s29 = sphi 0, %s26
      %s30 = sphi 0, %s27
      %s31 = sphi 0, %s28
      %s32 = sphi 0, %s29
      %s33 = sphi 0, %s30
      %s49 = sphi 0, %s51
      %s52 = sphi 0, %s49
      %s53 = sphi 0, %s52
      %s69 = sphi 0, %s53
      %s75 = sphi 0, %s77
      %s78 = sphi 0, %s75
      %s79 = sphi 0, %s78
      %s95 = sphi 0, %s79
      %s101 = sphi 0, %s103
      %s104 = sphi 0, %s101
      %s105 = sphi 0, %s104
      %s121 = sphi 0, %s105
      %s127 = sphi 0, %s129
      %s130 = sphi 0, %s127
      %s131 = sphi 0, %s130
      %s147 = sphi 0, %s131
      %s153 = sphi 0, %s155
      %s156 = sphi 0, %s153
      %s157 = sphi 0, %s156
      %s173 = sphi 0, %s157
      %s179 = sphi 0, %s181
      %s182 = sphi 0, %s179
      %s183 = sphi 0, %s182
      %s199 = sphi 0, %s183
      %s205 = sphi 0, %s207
      %s208 = sphi 0, %s205
      %s209 = sphi 0, %s208
      %s225 = sphi 0, %s209
      %s229 = sphi 0, %s229
      %s231 = sphi 0, %s229
      %s232 = sphi 0, %s231
      %s246 = sphi 0, %s232
      %s250 = sphi 0, %s250
      %s252 = sphi 0, %s250
      %s253 = sphi 0, %s252
      %s267 = sphi 0, %s253
      %s275 = sphi 0, %s277
      %s278 = sphi 0, %s275
      %s279 = sphi 0, %s278
      %s295 = sphi 0, %s279
    $region4: #{tpu_custom_call.1} parent=1 // loop_header_branch
      %21 = sbr.rel (%p19) target = $region8
    $region5: #{tpu_custom_call.1} parent=1 // loop_body
      %s23 = ssub.s32 %s18, 1
      %s24 = ssub.s32 %s18, 2
      %s34 = sadd.s32 1, %s27
      %p35 = scmp.ge.s32.totalorder %s34, 4
      %s36 = scalar_select %p35, 0, %s34
      %s37 = sadd.s32 1, %s26
      %s38 = scalar_select %p35, %s37, %s26
      %p39 = scmp.ge.s32.totalorder %s38, 2
      %s40 = scalar_select %p39, 0, %s38
      %s41 = sadd.s32 1, %s25
      %s42 = scalar_select %p39, %s41, %s25
      %p43 = scmp.ge.s32.totalorder %s42, 2
      %s44 = scalar_select %p43, 0, %s42
      %s45 = ssub.s32 %s25, %s44
      %s46 = ssub.s32 %s26, %s40
      %s47 = sor.u32 %s45, %s46
      %p48 = scmp.eq.s32.totalorder %s47, 0
      %s50 = sadd.s32 %s49, 1
      %s51 = scalar_select %p48, %s49, %s50
      %p54 = pneg %p48
      %p55 = scmp.eq.s32.totalorder %s18, 15
      %p56 = por %p54, %p55
      %p57 = scmp.ne.s32.totalorder %s49, %s52
      %p58 = scmp.eq.s32.totalorder %s18, 0
      %p59 = por %p57, %p58
      %p60 = scmp.ne.s32.totalorder %s49, %s52
      %p61 = scmp.eq.s32.totalorder %s23, 15
      %p62 = por %p60, %p61
      %p63 = scmp.ne.s32.totalorder %s52, %s53
      %p64 = scmp.eq.s32.totalorder %s23, 0
      %p65 = por %p63, %p64
      %p66 = scmp.ne.s32.totalorder %s52, %s53
      %p67 = scmp.eq.s32.totalorder %s24, 15
      %p68 = por %p66, %p67
      %p70 = scmp.ne.s32.totalorder %s53, %s69
      %p71 = scmp.eq.s32.totalorder %s24, 0
      %p72 = por %p70, %p71
      %s73 = ssub.s32 %s25, %s44
      %p74 = scmp.eq.s32.totalorder %s73, 0
      %s76 = sadd.s32 %s75, 1
      %s77 = scalar_select %p74, %s75, %s76
      %p80 = pneg %p74
      %p81 = scmp.eq.s32.totalorder %s18, 15
      %p82 = por %p80, %p81
      %p83 = scmp.ne.s32.totalorder %s75, %s78
      %p84 = scmp.eq.s32.totalorder %s18, 0
      %p85 = por %p83, %p84
      %p86 = scmp.ne.s32.totalorder %s75, %s78
      %p87 = scmp.eq.s32.totalorder %s23, 15
      %p88 = por %p86, %p87
      %p89 = scmp.ne.s32.totalorder %s78, %s79
      %p90 = scmp.eq.s32.totalorder %s23, 0
      %p91 = por %p89, %p90
      %p92 = scmp.ne.s32.totalorder %s78, %s79
      %p93 = scmp.eq.s32.totalorder %s24, 15
      %p94 = por %p92, %p93
      %p96 = scmp.ne.s32.totalorder %s79, %s95
      %p97 = scmp.eq.s32.totalorder %s24, 0
      %p98 = por %p96, %p97
      %s99 = ssub.s32 %s25, %s44
      %p100 = scmp.eq.s32.totalorder %s99, 0
      %s102 = sadd.s32 %s101, 1
      %s103 = scalar_select %p100, %s101, %s102
      %p106 = pneg %p100
      %p107 = scmp.eq.s32.totalorder %s18, 15
      %p108 = por %p106, %p107
      %p109 = scmp.ne.s32.totalorder %s101, %s104
      %p110 = scmp.eq.s32.totalorder %s18, 0
      %p111 = por %p109, %p110
      %p112 = scmp.ne.s32.totalorder %s101, %s104
      %p113 = scmp.eq.s32.totalorder %s23, 15
      %p114 = por %p112, %p113
      %p115 = scmp.ne.s32.totalorder %s104, %s105
      %p116 = scmp.eq.s32.totalorder %s23, 0
      %p117 = por %p115, %p116
      %p118 = scmp.ne.s32.totalorder %s104, %s105
      %p119 = scmp.eq.s32.totalorder %s24, 15
      %p120 = por %p118, %p119
      %p122 = scmp.ne.s32.totalorder %s105, %s121
      %p123 = scmp.eq.s32.totalorder %s24, 0
      %p124 = por %p122, %p123
      %s125 = ssub.s32 %s27, %s36
      %p126 = scmp.eq.s32.totalorder %s125, 0
      %s128 = sadd.s32 %s127, 1
      %s129 = scalar_select %p126, %s127, %s128
      %p132 = pneg %p126
      %p133 = scmp.eq.s32.totalorder %s18, 15
      %p134 = por %p132, %p133
      %p135 = scmp.ne.s32.totalorder %s127, %s130
      %p136 = scmp.eq.s32.totalorder %s18, 0
      %p137 = por %p135, %p136
      %p138 = scmp.ne.s32.totalorder %s127, %s130
      %p139 = scmp.eq.s32.totalorder %s23, 15
      %p140 = por %p138, %p139
      %p141 = scmp.ne.s32.totalorder %s130, %s131
      %p142 = scmp.eq.s32.totalorder %s23, 0
      %p143 = por %p141, %p142
      %p144 = scmp.ne.s32.totalorder %s130, %s131
      %p145 = scmp.eq.s32.totalorder %s24, 15
      %p146 = por %p144, %p145
      %p148 = scmp.ne.s32.totalorder %s131, %s147
      %p149 = scmp.eq.s32.totalorder %s24, 0
      %p150 = por %p148, %p149
      %s151 = ssub.s32 %s27, %s36
      %p152 = scmp.eq.s32.totalorder %s151, 0
      %s154 = sadd.s32 %s153, 1
      %s155 = scalar_select %p152, %s153, %s154
      %p158 = pneg %p152
      %p159 = scmp.eq.s32.totalorder %s18, 15
      %p160 = por %p158, %p159
      %p161 = scmp.ne.s32.totalorder %s153, %s156
      %p162 = scmp.eq.s32.totalorder %s18, 0
      %p163 = por %p161, %p162
      %p164 = scmp.ne.s32.totalorder %s153, %s156
      %p165 = scmp.eq.s32.totalorder %s23, 15
      %p166 = por %p164, %p165
      %p167 = scmp.ne.s32.totalorder %s156, %s157
      %p168 = scmp.eq.s32.totalorder %s23, 0
      %p169 = por %p167, %p168
      %p170 = scmp.ne.s32.totalorder %s156, %s157
      %p171 = scmp.eq.s32.totalorder %s24, 15
      %p172 = por %p170, %p171
      %p174 = scmp.ne.s32.totalorder %s157, %s173
      %p175 = scmp.eq.s32.totalorder %s24, 0
      %p176 = por %p174, %p175
      %s177 = ssub.s32 %s27, %s36
      %p178 = scmp.eq.s32.totalorder %s177, 0
      %s180 = sadd.s32 %s179, 1
      %s181 = scalar_select %p178, %s179, %s180
      %p184 = pneg %p178
      %p185 = scmp.eq.s32.totalorder %s18, 15
      %p186 = por %p184, %p185
      %p187 = scmp.ne.s32.totalorder %s179, %s182
      %p188 = scmp.eq.s32.totalorder %s18, 0
      %p189 = por %p187, %p188
      %p190 = scmp.ne.s32.totalorder %s179, %s182
      %p191 = scmp.eq.s32.totalorder %s23, 15
      %p192 = por %p190, %p191
      %p193 = scmp.ne.s32.totalorder %s182, %s183
      %p194 = scmp.eq.s32.totalorder %s23, 0
      %p195 = por %p193, %p194
      %p196 = scmp.ne.s32.totalorder %s182, %s183
      %p197 = scmp.eq.s32.totalorder %s24, 15
      %p198 = por %p196, %p197
      %p200 = scmp.ne.s32.totalorder %s183, %s199
      %p201 = scmp.eq.s32.totalorder %s24, 0
      %p202 = por %p200, %p201
      %s203 = ssub.s32 %s27, %s36
      %p204 = scmp.eq.s32.totalorder %s203, 0
      %s206 = sadd.s32 %s205, 1
      %s207 = scalar_select %p204, %s205, %s206
      %p210 = pneg %p204
      %p211 = scmp.eq.s32.totalorder %s18, 15
      %p212 = por %p210, %p211
      %p213 = scmp.ne.s32.totalorder %s205, %s208
      %p214 = scmp.eq.s32.totalorder %s18, 0
      %p215 = por %p213, %p214
      %p216 = scmp.ne.s32.totalorder %s205, %s208
      %p217 = scmp.eq.s32.totalorder %s23, 15
      %p218 = por %p216, %p217
      %p219 = scmp.ne.s32.totalorder %s208, %s209
      %p220 = scmp.eq.s32.totalorder %s23, 0
      %p221 = por %p219, %p220
      %p222 = scmp.ne.s32.totalorder %s208, %s209
      %p223 = scmp.eq.s32.totalorder %s24, 15
      %p224 = por %p222, %p223
      %p226 = scmp.ne.s32.totalorder %s209, %s225
      %p227 = scmp.eq.s32.totalorder %s24, 0
      %p228 = por %p226, %p227
      %s230 = sadd.s32 %s229, 1
      %p233 = scmp.eq.s32.totalorder %s18, 15
      %p234 = scmp.ne.s32.totalorder %s229, %s231
      %p235 = scmp.eq.s32.totalorder %s18, 0
      %p236 = por %p234, %p235
      %p237 = scmp.ne.s32.totalorder %s229, %s231
      %p238 = scmp.eq.s32.totalorder %s23, 15
      %p239 = por %p237, %p238
      %p240 = scmp.ne.s32.totalorder %s231, %s232
      %p241 = scmp.eq.s32.totalorder %s23, 0
      %p242 = por %p240, %p241
      %p243 = scmp.ne.s32.totalorder %s231, %s232
      %p244 = scmp.eq.s32.totalorder %s24, 15
      %p245 = por %p243, %p244
      %p247 = scmp.ne.s32.totalorder %s232, %s246
      %p248 = scmp.eq.s32.totalorder %s24, 0
      %p249 = por %p247, %p248
      %s251 = sadd.s32 %s250, 1
      %p254 = scmp.eq.s32.totalorder %s18, 15
      %p255 = scmp.ne.s32.totalorder %s250, %s252
      %p256 = scmp.eq.s32.totalorder %s18, 0
      %p257 = por %p255, %p256
      %p258 = scmp.ne.s32.totalorder %s250, %s252
      %p259 = scmp.eq.s32.totalorder %s23, 15
      %p260 = por %p258, %p259
      %p261 = scmp.ne.s32.totalorder %s252, %s253
      %p262 = scmp.eq.s32.totalorder %s23, 0
      %p263 = por %p261, %p262
      %p264 = scmp.ne.s32.totalorder %s252, %s253
      %p265 = scmp.eq.s32.totalorder %s24, 15
      %p266 = por %p264, %p265
      %p268 = scmp.ne.s32.totalorder %s253, %s267
      %p269 = scmp.eq.s32.totalorder %s24, 0
      %p270 = por %p268, %p269
      %s271 = ssub.s32 %s25, %s44
      %s272 = ssub.s32 %s26, %s40
      %s273 = sor.u32 %s271, %s272
      %p274 = scmp.eq.s32.totalorder %s273, 0
      %s276 = sadd.s32 %s275, 1
      %s277 = scalar_select %p274, %s275, %s276
      %p280 = pneg %p274
      %p281 = scmp.eq.s32.totalorder %s18, 15
      %p282 = por %p280, %p281
      %p283 = scmp.ne.s32.totalorder %s275, %s278
      %p284 = scmp.eq.s32.totalorder %s18, 0
      %p285 = por %p283, %p284
      %p286 = scmp.ne.s32.totalorder %s275, %s278
      %p287 = scmp.eq.s32.totalorder %s23, 15
      %p288 = por %p286, %p287
      %p289 = scmp.ne.s32.totalorder %s278, %s279
      %p290 = scmp.eq.s32.totalorder %s23, 0
      %p291 = por %p289, %p290
      %p292 = scmp.ne.s32.totalorder %s278, %s279
      %p293 = scmp.eq.s32.totalorder %s24, 15
      %p294 = por %p292, %p293
      %p296 = scmp.ne.s32.totalorder %s279, %s295
      %p297 = scmp.eq.s32.totalorder %s24, 0
      %p298 = por %p296, %p297
      %p299 = scmp.le.s32.totalorder 1, %s18
      %p300 = scmp.lt.s32.totalorder %s18, 17
      %p301 = pnand %p299, %p300
      %p302 = pneg %p301
      // Predicated region
      $region9: #{tpu_custom_call.1} parent=5 // pred_check
        _
      $region10: #{tpu_custom_call.1} parent=5 // pred_check_branch
        %304 = sbr.rel (%p301) target = $region12
      $region11: #{tpu_custom_call.1} parent=5 // pred_region
        %s305 = ssub.s32 %s18, 1
        // Predicated region
        $region13: #{tpu_custom_call.1} parent=11 // pred_check
          %p306 = pneg %p242
        $region14: #{tpu_custom_call.1} parent=11 // pred_check_branch
          %308 = sbr.rel (%p306) target = $region16
        $region15: #{tpu_custom_call.1} parent=11 // pred_region
          _
        $region16: #{tpu_custom_call.1} parent=11 // pred_fallthru
          _
        // Predicated region
        $region17: #{tpu_custom_call.1} parent=11 // pred_check
          %p309 = pneg %p263
        $region18: #{tpu_custom_call.1} parent=11 // pred_check_branch
          %311 = sbr.rel (%p309) target = $region20
        $region19: #{tpu_custom_call.1} parent=11 // pred_region
          _
        $region20: #{tpu_custom_call.1} parent=11 // pred_fallthru
          _
      $region12: #{tpu_custom_call.1} parent=5 // pred_fallthru
        _
      %p312 = scmp.lt.s32.totalorder %s18, 16
      // Predicated region
      $region21: #{tpu_custom_call.1} parent=5 // pred_check
        %p313 = pneg %p312
      $region22: #{tpu_custom_call.1} parent=5 // pred_check_branch
        %315 = sbr.rel (%p313) target = $region24
      $region23: #{tpu_custom_call.1} parent=5 // pred_region
        // Predicated region
        $region25: #{tpu_custom_call.1} parent=23 // pred_check
          %p316 = pneg %p59
        $region26: #{tpu_custom_call.1} parent=23 // pred_check_branch
          %318 = sbr.rel (%p316) target = $region28
        $region27: #{tpu_custom_call.1} parent=23 // pred_region
          %p319 = scmp.lt.s32.totalorder %s25, 1
          %s320 = scalar_select %p319, %s25, 1
          %p321 = scmp.lt.s32.totalorder %s26, 1
          %s322 = scalar_select %p321, %s26, 1
          %s323 = smul.addr %s320, 2
          %s324 = sadd.s32 %s322, %s323
          %s325 = smul.addr %s324, 8
          %s326 = scalar_lea.vmem %s0, %s325
        $region28: #{tpu_custom_call.1} parent=23 // pred_fallthru
          _
        // Predicated region
        $region29: #{tpu_custom_call.1} parent=23 // pred_check
          %p327 = pneg %p85
        $region30: #{tpu_custom_call.1} parent=23 // pred_check_branch
          %329 = sbr.rel (%p327) target = $region32
        $region31: #{tpu_custom_call.1} parent=23 // pred_region
          %p330 = scmp.lt.s32.totalorder %s25, 1
          %s331 = scalar_select %p330, %s25, 1
          %s332 = smul.addr %s331, 2
          %s333 = smul.addr %s332, 8
          %s334 = scalar_lea.vmem %s1, %s333
        $region32: #{tpu_custom_call.1} parent=23 // pred_fallthru
          _
        // Predicated region
        $region33: #{tpu_custom_call.1} parent=23 // pred_check
          %p335 = pneg %p111
        $region34: #{tpu_custom_call.1} parent=23 // pred_check_branch
          %337 = sbr.rel (%p335) target = $region36
        $region35: #{tpu_custom_call.1} parent=23 // pred_region
          %p338 = scmp.lt.s32.totalorder %s25, 1
          %s339 = scalar_select %p338, %s25, 1
          %s340 = smul.addr %s339, 2
          %s341 = smul.addr %s340, 8
          %s342 = scalar_lea.vmem %s2, %s341
        $region36: #{tpu_custom_call.1} parent=23 // pred_fallthru
          _
        // Predicated region
        $region37: #{tpu_custom_call.1} parent=23 // pred_check
          %p343 = pneg %p137
        $region38: #{tpu_custom_call.1} parent=23 // pred_check_branch
          %345 = sbr.rel (%p343) target = $region40
        $region39: #{tpu_custom_call.1} parent=23 // pred_region
          %p346 = scmp.lt.s32.totalorder %s27, 3
          %s347 = scalar_select %p346, %s27, 3
          %s348 = smul.addr %s347, 16
          %s349 = smul.addr %s348, 8
          %s350 = scalar_lea.vmem %s3, %s349
        $region40: #{tpu_custom_call.1} parent=23 // pred_fallthru
          _
        // Predicated region
        $region41: #{tpu_custom_call.1} parent=23 // pred_check
          %p351 = pneg %p163
        $region42: #{tpu_custom_call.1} parent=23 // pred_check_branch
          %353 = sbr.rel (%p351) target = $region44
        $region43: #{tpu_custom_call.1} parent=23 // pred_region
          %p354 = scmp.lt.s32.totalorder %s27, 3
          %s355 = scalar_select %p354, %s27, 3
          %s356 = smul.addr %s355, 16
          %s357 = smul.addr %s356, 8
          %s358 = scalar_lea.vmem %s4, %s357
        $region44: #{tpu_custom_call.1} parent=23 // pred_fallthru
          _
        // Predicated region
        $region45: #{tpu_custom_call.1} parent=23 // pred_check
          %p359 = pneg %p189
        $region46: #{tpu_custom_call.1} parent=23 // pred_check_branch
          %361 = sbr.rel (%p359) target = $region48
        $region47: #{tpu_custom_call.1} parent=23 // pred_region
          %p362 = scmp.lt.s32.totalorder %s27, 3
          %s363 = scalar_select %p362, %s27, 3
          %s364 = smul.addr %s363, 16
          %s365 = smul.addr %s364, 8
          %s366 = scalar_lea.vmem %s5, %s365
        $region48: #{tpu_custom_call.1} parent=23 // pred_fallthru
          _
        // Predicated region
        $region49: #{tpu_custom_call.1} parent=23 // pred_check
          %p367 = pneg %p215
        $region50: #{tpu_custom_call.1} parent=23 // pred_check_branch
          %369 = sbr.rel (%p367) target = $region52
        $region51: #{tpu_custom_call.1} parent=23 // pred_region
          %p370 = scmp.lt.s32.totalorder %s27, 3
          %s371 = scalar_select %p370, %s27, 3
          %s372 = smul.addr %s371, 4
          %s373 = smul.addr %s372, 8
          %s374 = scalar_lea.vmem %s6, %s373
        $region52: #{tpu_custom_call.1} parent=23 // pred_fallthru
          _
      $region24: #{tpu_custom_call.1} parent=5 // pred_fallthru
        _
      %p375 = scmp.le.s32.totalorder 1, %s18
      %p376 = scmp.lt.s32.totalorder %s18, 17
      %p377 = pnand %p375, %p376
      %p378 = pneg %p377
      // Predicated region
      $region53: #{tpu_custom_call.1} parent=5 // pred_check
        _
      $region54: #{tpu_custom_call.1} parent=5 // pred_check_branch
        %380 = sbr.rel (%p377) target = $region56
      $region55: #{tpu_custom_call.1} parent=5 // pred_region
        %s381 = ssub.s32 %s18, 1
        %p382 = scmp.lt.s32.totalorder %s28, 1
        %s383 = scalar_select %p382, %s28, 1
        %p384 = scmp.lt.s32.totalorder %s29, 1
        %s385 = scalar_select %p384, %s29, 1
        %s386 = smul.addr %s383, 2
        %s387 = sadd.s32 %s385, %s386
        %s388 = smul.addr %s387, 8
        %s389 = scalar_lea.vmem %s0, %s388
        %p390 = pneg %p65
        %p391 = pneg %p62
        %p392 = scmp.lt.s32.totalorder %s28, 1
        %s393 = scalar_select %p392, %s28, 1
        %s394 = smul.addr %s393, 2
        %s395 = smul.addr %s394, 8
        %s396 = scalar_lea.vmem %s1, %s395
        %p397 = pneg %p91
        %p398 = pneg %p88
        %p399 = scmp.lt.s32.totalorder %s28, 1
        %s400 = scalar_select %p399, %s28, 1
        %s401 = smul.addr %s400, 2
        %s402 = smul.addr %s401, 8
        %s403 = scalar_lea.vmem %s2, %s402
        %p404 = pneg %p117
        %p405 = pneg %p114
        %p406 = scmp.lt.s32.totalorder %s30, 3
        %s407 = scalar_select %p406, %s30, 3
        %s408 = smul.addr %s407, 16
        %s409 = smul.addr %s408, 8
        %s410 = scalar_lea.vmem %s3, %s409
        %p411 = pneg %p143
        %p412 = pneg %p140
        %p413 = scmp.lt.s32.totalorder %s30, 3
        %s414 = scalar_select %p413, %s30, 3
        %s415 = smul.addr %s414, 16
        %s416 = smul.addr %s415, 8
        %s417 = scalar_lea.vmem %s4, %s416
        %p418 = pneg %p169
        %p419 = pneg %p166
        %p420 = scmp.lt.s32.totalorder %s30, 3
        %s421 = scalar_select %p420, %s30, 3
        %s422 = smul.addr %s421, 16
        %s423 = smul.addr %s422, 8
        %s424 = scalar_lea.vmem %s5, %s423
        %p425 = pneg %p195
        %p426 = pneg %p192
        %p427 = scmp.lt.s32.totalorder %s30, 3
        %s428 = scalar_select %p427, %s30, 3
        %s429 = smul.addr %s428, 4
        %s430 = smul.addr %s429, 8
        %s431 = scalar_lea.vmem %s6, %s430
        %p432 = pneg %p221
        %p433 = pneg %p218
        %p434 = pneg %p242
        %p435 = pneg %p239
        %p436 = pneg %p263
        %p437 = pneg %p260
        %p438 = pneg %p291
        %p439 = pneg %p288
        %s440 = sand.u32 %s278, 1
        %s441 = scalar_lea.sflag [#allocation4], %s440
        %s442 = sand.u32 %s278, 1
        %s443 = smul.addr %s442, 8
        %s444 = scalar_lea.vmem [#allocation3], %s443
        %p445 = scmp.lt.s32.totalorder %s28, 1
        %s446 = scalar_select %p445, %s28, 1
        %p447 = scmp.lt.s32.totalorder %s29, 1
        %s448 = scalar_select %p447, %s29, 1
        %s449 = smul.addr %s446, 2
        %s450 = sadd.s32 %s448, %s449
        %s451 = smul.addr %s450, 8
        %s452 = scalar_lea.vmem %s0, %s451
        %p453 = scmp.lt.s32.totalorder %s28, 1
        %s454 = scalar_select %p453, %s28, 1
        %s455 = smul.addr %s454, 2
        %s456 = smul.addr %s455, 8
        %s457 = scalar_lea.vmem %s1, %s456
        %p458 = scmp.lt.s32.totalorder %s28, 1
        %s459 = scalar_select %p458, %s28, 1
        %s460 = smul.addr %s459, 2
        %s461 = smul.addr %s460, 8
        %s462 = scalar_lea.vmem %s2, %s461
        %p463 = scmp.lt.s32.totalorder %s30, 3
        %s464 = scalar_select %p463, %s30, 3
        %s465 = smul.addr %s464, 16
        %s466 = smul.addr %s465, 8
        %s467 = scalar_lea.vmem %s3, %s466
        %p468 = scmp.lt.s32.totalorder %s30, 3
        %s469 = scalar_select %p468, %s30, 3
        %s470 = smul.addr %s469, 16
        %s471 = smul.addr %s470, 8
        %s472 = scalar_lea.vmem %s4, %s471
        %p473 = scmp.lt.s32.totalorder %s30, 3
        %s474 = scalar_select %p473, %s30, 3
        %s475 = smul.addr %s474, 16
        %s476 = smul.addr %s475, 8
        %s477 = scalar_lea.vmem %s5, %s476
        %p478 = scmp.lt.s32.totalorder %s30, 3
        %s479 = scalar_select %p478, %s30, 3
        %s480 = smul.addr %s479, 4
        %s481 = smul.addr %s480, 8
        %s482 = scalar_lea.vmem %s6, %s481
        %p483 = scmp.eq.s32.totalorder %s30, 0
        // Predicated region
        $region57: #{tpu_custom_call.1} parent=55 // pred_check
          %p484 = pneg %p483
        $region58: #{tpu_custom_call.1} parent=55 // pred_check_branch
          %486 = sbr.rel (%p484) target = $region60
        $region59: #{tpu_custom_call.1} parent=55 // pred_region
          %487 = vst [vmem:[#allocation2] sm:$0xff] 0.0
        $region60: #{tpu_custom_call.1} parent=55 // pred_fallthru
          _
        %v488 = vld [vmem:[%s452] sm:$0xff]
        %v489 = vld [vmem:[%s467] sm:$0xff]
        %v490 = vld [vmem:[%s467 + $0x8] sm:$0xff]
        %v491 = vld [vmem:[%s467 + $0x10] sm:$0xff]
        %v492 = vld [vmem:[%s467 + $0x18] sm:$0xff]
        %v493 = vld [vmem:[%s467 + $0x20] sm:$0xff]
        %v494 = vld [vmem:[%s467 + $0x28] sm:$0xff]
        %v495 = vld [vmem:[%s467 + $0x30] sm:$0xff]
        %v496 = vld [vmem:[%s467 + $0x38] sm:$0xff]
        %v497 = vld [vmem:[%s467 + $0x40] sm:$0xff]
        %v498 = vld [vmem:[%s467 + $0x48] sm:$0xff]
        %v499 = vld [vmem:[%s467 + $0x50] sm:$0xff]
        %v500 = vld [vmem:[%s467 + $0x58] sm:$0xff]
        %v501 = vld [vmem:[%s467 + $0x60] sm:$0xff]
        %v502 = vld [vmem:[%s467 + $0x68] sm:$0xff]
        %v503 = vld [vmem:[%s467 + $0x70] sm:$0xff]
        %v504 = vld [vmem:[%s467 + $0x78] sm:$0xff]
        %505 = vmatpush.msra.mxu0 %v504
        %506 = vmatpush.msra.mxu0 %v503
        %507 = vmatpush.msra.mxu0 %v502
        %508 = vmatpush.msra.mxu0 %v501
        %509 = vmatpush.msra.mxu0 %v500
        %510 = vmatpush.msra.mxu0 %v499
        %511 = vmatpush.msra.mxu0 %v498
        %512 = vmatpush.msra.mxu0 %v497
        %513 = vmatpush.msra.mxu0 %v496
        %514 = vmatpush.msra.mxu0 %v495
        %515 = vmatpush.msra.mxu0 %v494
        %516 = vmatpush.msra.mxu0 %v493
        %517 = vmatpush.msra.mxu0 %v492
        %518 = vmatpush.msra.mxu0 %v491
        %519 = vmatpush.msra.mxu0 %v490
        %520 = vmatpush.msra.mxu0 %v489
        %521 = vmatmul.f32.gmra.mxu0 %v488
        %v522 = vpop.f32.mrf.mxu0
        %v523 = vadd.f32 0.0, %v522
        %524 = vdwg.mxu0
        %v525 = vld [vmem:[%s457] sm:$0xff]
        %v526 = vld [vmem:[%s457 + $0x8] sm:$0xff]
        %v527 = vld [vmem:[%s472] sm:$0xff]
        %v528 = vld [vmem:[%s472 + $0x8] sm:$0xff]
        %v529 = vld [vmem:[%s472 + $0x10] sm:$0xff]
        %v530 = vld [vmem:[%s472 + $0x18] sm:$0xff]
        %v531 = vld [vmem:[%s472 + $0x20] sm:$0xff]
        %v532 = vld [vmem:[%s472 + $0x28] sm:$0xff]
        %v533 = vld [vmem:[%s472 + $0x30] sm:$0xff]
        %v534 = vld [vmem:[%s472 + $0x38] sm:$0xff]
        %v535 = vld [vmem:[%s472 + $0x40] sm:$0xff]
        %v536 = vld [vmem:[%s472 + $0x48] sm:$0xff]
        %v537 = vld [vmem:[%s472 + $0x50] sm:$0xff]
        %v538 = vld [vmem:[%s472 + $0x58] sm:$0xff]
        %v539 = vld [vmem:[%s472 + $0x60] sm:$0xff]
        %v540 = vld [vmem:[%s472 + $0x68] sm:$0xff]
        %v541 = vld [vmem:[%s472 + $0x70] sm:$0xff]
        %v542 = vld [vmem:[%s472 + $0x78] sm:$0xff]
        %543 = vmatpush.msra.mxu0 %v542
        %544 = vmatpush.msra.mxu0 %v541
        %545 = vmatpush.msra.mxu0 %v540
        %546 = vmatpush.msra.mxu0 %v539
        %547 = vmatpush.msra.mxu0 %v538
        %548 = vmatpush.msra.mxu0 %v537
        %549 = vmatpush.msra.mxu0 %v536
        %550 = vmatpush.msra.mxu0 %v535
        %551 = vmatpush.msra.mxu0 %v534
        %552 = vmatpush.msra.mxu0 %v533
        %553 = vmatpush.msra.mxu0 %v532
        %554 = vmatpush.msra.mxu0 %v531
        %555 = vmatpush.msra.mxu0 %v530
        %556 = vmatpush.msra.mxu0 %v529
        %557 = vmatpush.msra.mxu0 %v528
        %558 = vmatpush.msra.mxu0 %v527
        %559 = vmatmul.f32.gmra.mxu0 %v525
        %v560 = vpop.f32.mrf.mxu0
        %v561 = vadd.f32 0.0, %v560
        %562 = vmatmul.f32.gmra.mxu0 %v526
        %v563 = vpop.f32.mrf.mxu0
        %v564 = vadd.f32 0.0, %v563
        %565 = vdwg.mxu0
        %v566 = vld [vmem:[%s462] sm:$0xff]
        %v567 = vld [vmem:[%s462 + $0x8] sm:$0xff]
        %v568 = vld [vmem:[%s477] sm:$0xff]
        %v569 = vld [vmem:[%s477 + $0x8] sm:$0xff]
        %v570 = vld [vmem:[%s477 + $0x10] sm:$0xff]
        %v571 = vld [vmem:[%s477 + $0x18] sm:$0xff]
        %v572 = vld [vmem:[%s477 + $0x20] sm:$0xff]
        %v573 = vld [vmem:[%s477 + $0x28] sm:$0xff]
        %v574 = vld [vmem:[%s477 + $0x30] sm:$0xff]
        %v575 = vld [vmem:[%s477 + $0x38] sm:$0xff]
        %v576 = vld [vmem:[%s477 + $0x40] sm:$0xff]
        %v577 = vld [vmem:[%s477 + $0x48] sm:$0xff]
        %v578 = vld [vmem:[%s477 + $0x50] sm:$0xff]
        %v579 = vld [vmem:[%s477 + $0x58] sm:$0xff]
        %v580 = vld [vmem:[%s477 + $0x60] sm:$0xff]
        %v581 = vld [vmem:[%s477 + $0x68] sm:$0xff]
        %v582 = vld [vmem:[%s477 + $0x70] sm:$0xff]
        %v583 = vld [vmem:[%s477 + $0x78] sm:$0xff]
        %584 = vmatpush.msra.mxu0 %v583
        %585 = vmatpush.msra.mxu0 %v582
        %586 = vmatpush.msra.mxu0 %v581
        %587 = vmatpush.msra.mxu0 %v580
        %588 = vmatpush.msra.mxu0 %v579
        %589 = vmatpush.msra.mxu0 %v578
        %590 = vmatpush.msra.mxu0 %v577
        %591 = vmatpush.msra.mxu0 %v576
        %592 = vmatpush.msra.mxu0 %v575
        %593 = vmatpush.msra.mxu0 %v574
        %594 = vmatpush.msra.mxu0 %v573
        %595 = vmatpush.msra.mxu0 %v572
        %596 = vmatpush.msra.mxu0 %v571
        %597 = vmatpush.msra.mxu0 %v570
        %598 = vmatpush.msra.mxu0 %v569
        %599 = vmatpush.msra.mxu0 %v568
        %600 = vmatmul.f32.gmra.mxu0 %v566
        %v601 = vpop.f32.mrf.mxu0
        %v602 = vadd.f32 0.0, %v601
        %603 = vmatmul.f32.gmra.mxu0 %v567
        %v604 = vpop.f32.mrf.mxu0
        %v605 = vadd.f32 0.0, %v604
        %606 = vdwg.mxu0
        %vm607 = vcmask 261120
        %v609 = vsel %vm607, %v523, 0
        %v612 = vsel %vm607, %v561, 0
        %v615 = vsel %vm607, %v564, 0
        %617 = vmatpush.xpose.msra.mxu0 0.0
        %618 = vmatpush.xpose.msra.mxu0 0.0
        %619 = vmatpush.xpose.msra.mxu0 0.0
        %620 = vmatpush.xpose.msra.mxu0 0.0
        %621 = vmatpush.xpose.msra.mxu0 0.0
        %622 = vmatpush.xpose.msra.mxu0 0.0
        %623 = vmatpush.xpose.msra.mxu0 0.0
        %624 = vmatpush.xpose.msra.mxu0 0.0
        %625 = vmatpush.xpose.msra.mxu0 0.0
        %626 = vmatpush.xpose.msra.mxu0 0.0
        %627 = vmatpush.xpose.msra.mxu0 0.0
        %628 = vmatpush.xpose.msra.mxu0 0.0
        %629 = vmatpush.xpose.msra.mxu0 0.0
        %630 = vmatpush.xpose.msra.mxu0 0.0
        %631 = vmatpush.xpose.msra.mxu0 %v615
        %632 = vmatpush.xpose.msra.mxu0 %v612
        %633 = vmatmul.f32.gmra.mxu0 %v609
        %v634 = vpop.f32.mrf.mxu0
        %v635 = vadd.f32 0.0, %v634
        %636 = vdwg.mxu0
        %v637 = vmul.f32 %v635, 0.17677669
        %vm638 = vcmask 130048
        %v639 = vsel %vm638, %v637, -inf
        %640 = vmax.xlane.f32.xlu0 %v639
        %v641 = vpop.xlane.xlu0 %640
        %v642 = vsub.f32 %v637, %v641
        %v643 = vmul.f32 %v642, 1.442695
        %v644 = vpow.pop %v643
        %v645 = vsel %vm638, %v644, 0.0
        %646 = vadd.xlane.f32.xlu0 %v645
        %v647 = vpop.xlane.xlu0 %646
        %v649 = vsel %vm638, %v644, 0
        %651 = vmatpush.msra.mxu0 0.0
        %652 = vmatpush.msra.mxu0 0.0
        %653 = vmatpush.msra.mxu0 0.0
        %654 = vmatpush.msra.mxu0 0.0
        %655 = vmatpush.msra.mxu0 0.0
        %656 = vmatpush.msra.mxu0 0.0
        %657 = vmatpush.msra.mxu0 0.0
        %658 = vmatpush.msra.mxu0 0.0
        %659 = vmatpush.msra.mxu0 0.0
        %660 = vmatpush.msra.mxu0 0.0
        %661 = vmatpush.msra.mxu0 0.0
        %662 = vmatpush.msra.mxu0 0.0
        %663 = vmatpush.msra.mxu0 0.0
        %664 = vmatpush.msra.mxu0 0.0
        %665 = vmatpush.msra.mxu0 %v605
        %666 = vmatpush.msra.mxu0 %v602
        %667 = vmatmul.f32.gmra.mxu0 %v649
        %v668 = vpop.f32.mrf.mxu0
        %v669 = vadd.f32 0.0, %v668
        %670 = vdwg.mxu0
        %v671 = vrcp.pop %v647
        %v672 = vmul.f32 %v669, %v671
        %v673 = vld [vmem:[#allocation2] sm:$0xff]
        %v674 = vld [vmem:[%s482] sm:$0xff]
        %v675 = vld [vmem:[%s482 + $0x8] sm:$0xff]
        %v676 = vld [vmem:[%s482 + $0x10] sm:$0xff]
        %v677 = vld [vmem:[%s482 + $0x18] sm:$0xff]
        %v679 = vsel %vm607, %v672, 0
        %681 = vmatpush.msra.mxu0 0.0
        %682 = vmatpush.msra.mxu0 0.0
        %683 = vmatpush.msra.mxu0 0.0
        %684 = vmatpush.msra.mxu0 0.0
        %685 = vmatpush.msra.mxu0 0.0
        %686 = vmatpush.msra.mxu0 0.0
        %687 = vmatpush.msra.mxu0 0.0
        %688 = vmatpush.msra.mxu0 0.0
        %689 = vmatpush.msra.mxu0 0.0
        %690 = vmatpush.msra.mxu0 0.0
        %691 = vmatpush.msra.mxu0 0.0
        %692 = vmatpush.msra.mxu0 0.0
        %693 = vmatpush.msra.mxu0 %v677
        %694 = vmatpush.msra.mxu0 %v676
        %695 = vmatpush.msra.mxu0 %v675
        %696 = vmatpush.msra.mxu0 %v674
        %697 = vmatmul.f32.gmra.mxu0 %v679
        %v698 = vpop.f32.mrf.mxu0
        %v699 = vadd.f32 0.0, %v698
        %700 = vdwg.mxu0
        %v701 = vadd.f32 %v673, %v699
        %702 = vst [vmem:[#allocation2] sm:$0xff] %v701
        %p703 = scmp.eq.s32.totalorder %s30, 3
        // Predicated region
        $region61: #{tpu_custom_call.1} parent=55 // pred_check
          %p704 = pneg %p703
        $region62: #{tpu_custom_call.1} parent=55 // pred_check_branch
          %706 = sbr.rel (%p704) target = $region64
        $region63: #{tpu_custom_call.1} parent=55 // pred_region
          %v707 = vld [vmem:[#allocation2] sm:$0xff]
          %v708 = vadd.f32 %v707, %v488
          %709 = vadd.xlane.f32.xlu0 %v708
          %v710 = vpop.xlane.xlu0 %709
          %v711 = vrcp.pop 128.0
          %v712 = vmul.f32 128.0, %v711
          %v713 = vsub.f32 1.0, %v712
          %v714 = vmul.f32 %v711, %v713
          %v715 = vadd.f32 %v711, %v714
          %vm716 = vweird.f32 %v711
          %v717 = vsel %vm716, %v711, %v715
          %v718 = vmul.f32 %v710, %v717
          %v719 = vsub.f32 %v708, %v718
          %v720 = vmul.f32 %v719, %v719
          %721 = vadd.xlane.f32.xlu0 %v720
          %v722 = vpop.xlane.xlu0 %721
          %v723 = vmul.f32 %v722, %v717
          %v724 = vadd.f32 %v723, 1e-05
          %v725 = vrsqrt.pop %v724
          %v726 = vmul.f32 %v725, %v724
          %v727 = vmul.f32 %v726, %v725
          %v728 = vmul.f32 0.5, %v727
          %v729 = vsub.f32 1.5, %v728
          %v730 = vmul.f32 %v725, %v729
          %vm731 = vweird.f32 %v724
          %vm732 = vweird.f32 %v725
          %vm733 = vmor %vm731, %vm732
          %v734 = vsel %vm733, %v725, %v730
          %v735 = vmul.f32 %v719, %v734
          %v736 = vld [vmem:[%s7] sm:$0x1]
          %v738 = vperm.slane %v736, 0
          %v740 = vmul.f32 %v735, %v738
          %v741 = vld [vmem:[%s8] sm:$0x1]
          %v743 = vperm.slane %v741, 0
          %v745 = vadd.f32 %v740, %v743
          %746 = vst [vmem:[%s444] sm:$0xff] %v745
        $region64: #{tpu_custom_call.1} parent=55 // pred_fallthru
          _
        %s747 = sand.u32 %s278, 1
        %s748 = scalar_lea.sflag [#allocation4], %s747
        %s749 = sand.u32 %s278, 1
        %s750 = smul.addr %s749, 8
        %s751 = scalar_lea.vmem [#allocation3], %s750
        // Predicated region
        $region65: #{tpu_custom_call.1} parent=55 // pred_check
          %p752 = pneg %p288
        $region66: #{tpu_custom_call.1} parent=55 // pred_check_branch
          %754 = sbr.rel (%p752) target = $region68
        $region67: #{tpu_custom_call.1} parent=55 // pred_region
          %756 = vsyncadd %s748, 0
          %s757 = smul.addr %s28, 2
          %s758 = sadd.s32 %s29, %s757
          %s759 = smul.addr %s758, 8
          %s760 = scalar_lea.hbm %s9, %s759
          %s762 = sshll.u32 %s751, 4
          %s763 = int_to_ptr.vmem [resolvable:$true] %s762
          %s764 = sshll.u32 %s760, 4
          %s765 = int_to_ptr.hbm [resolvable:$true] %s764
          %767 = dma.vmem_to_hbm [thread:$0]  %s763, 128, %s765, %s748
        $region68: #{tpu_custom_call.1} parent=55 // pred_fallthru
          _
      $region56: #{tpu_custom_call.1} parent=5 // pred_fallthru
        _
      %p768 = scmp.le.s32.totalorder 2, %s18
      // Predicated region
      $region69: #{tpu_custom_call.1} parent=5 // pred_check
        %p769 = pneg %p768
      $region70: #{tpu_custom_call.1} parent=5 // pred_check_branch
        %771 = sbr.rel (%p769) target = $region72
      $region71: #{tpu_custom_call.1} parent=5 // pred_region
        %s772 = ssub.s32 %s18, 2
        // Predicated region
        $region73: #{tpu_custom_call.1} parent=71 // pred_check
          %p773 = pneg %p294
        $region74: #{tpu_custom_call.1} parent=71 // pred_check_branch
          %775 = sbr.rel (%p773) target = $region76
        $region75: #{tpu_custom_call.1} parent=71 // pred_region
          %s776 = sand.u32 %s279, 1
          %s777 = scalar_lea.sflag [#allocation4], %s776
          %s778 = sand.u32 %s279, 1
          %s779 = smul.addr %s778, 8
          %s780 = scalar_lea.vmem [#allocation3], %s779
          %782 = dma.done %s777, 128
        $region76: #{tpu_custom_call.1} parent=71 // pred_fallthru
          _
      $region72: #{tpu_custom_call.1} parent=5 // pred_fallthru
        _
    $region6: #{tpu_custom_call.1} parent=1 // loop_footer
      %s22 = sadd.s32 1, %s18
    $region7: #{tpu_custom_call.1} parent=1 // loop_footer_branch
      %17 = sbr.rel target = $region3
    $region8: #{tpu_custom_call.1} parent=1 // loop_exit
      _
    %783 = vsyncpa [#allocation4], 1
    %s784 = scalar_lea.sflag [#allocation4], 1
    %785 = vsyncpa %s784, 1

</llo_original>
